<compile_context>
chip_gen: v7x
topology: tpu7x:2x2x1
jax: 0.10.0
libtpu: 0.0.40
codegen_flags: <defaults>
</compile_context>

<pallas_src>
import jax
import jax.numpy as jnp
from jax.experimental import pallas as pl
from jax.experimental.pallas import tpu as pltpu


_LANES = 128
_TINY_BYTES = 64 << 10  # below this per operand, plain XLA elementwise wins


def _cross_stitch_kernel(w_ref, x1_ref, x2_ref, o1_ref, o2_ref):
    # w_ref lives in SMEM (f32): [w11, w12, w21, w22]
    w11 = w_ref[0]
    w12 = w_ref[1]
    w21 = w_ref[2]
    w22 = w_ref[3]
    x1 = x1_ref[...].astype(jnp.float32)
    x2 = x2_ref[...].astype(jnp.float32)
    o1_ref[...] = (w11 * x1 + w12 * x2).astype(o1_ref.dtype)
    o2_ref[...] = (w21 * x1 + w22 * x2).astype(o2_ref.dtype)


def _round_up(x, m):
    return ((x + m - 1) // m) * m


def _jnp_cross_stitch(x1, x2, w11, w12, w21, w22):
    """Plain-XLA path (tiny inputs / <128-element tails). f32 math, cast back."""
    dtype = x1.dtype
    a = x1.astype(jnp.float32)
    b = x2.astype(jnp.float32)
    y1 = (w11 * a + w12 * b).astype(dtype)
    y2 = (w21 * a + w22 * b).astype(dtype)
    return y1, y2


def _tpu_generation_info():
    """Best-effort (tensorcores_per_chip, vmem_bytes_per_core) for the local TPU."""
    num_cores, vmem = 1, 128 << 20
    try:
        info = pltpu.get_tpu_info()
        vmem = int(getattr(info, "vmem_capacity_bytes", vmem))
    except Exception:
        pass
    try:
        kind = (getattr(jax.devices()[0], "device_kind", "") or "").lower()
        if "v7" in kind:
            num_cores = 2            # 2 TensorCores per chip
            vmem = min(vmem, 64 << 20)  # 64 MiB VMEM per TC
    except Exception:
        pass
    return num_cores, vmem


def cross_stitch(x1, x2, w11, w12, w21, w22, *,
                 tile_rows=None, use_kernel=None, donate_inputs=False):
    """Apply a cross-stitch unit to two same-shaped feature maps (e.g. NCHW).

    use_kernel: None -> auto (kernel only for streaming-sized inputs),
                True/False -> force the Pallas / plain-jnp path.
    donate_inputs: alias x1->out1, x2->out2 inside the pallas_call; only use
                when the caller no longer needs the inputs.
    """
    assert x1.shape == x2.shape and x1.dtype == x2.dtype
    orig_shape = x1.shape
    dtype = x1.dtype
    itemsize = jnp.dtype(dtype).itemsize
    n_elem = int(x1.size)

    # --- tiny-input fast path: launch/pipeline overhead dominates below ~64 KiB.
    if use_kernel is None:
        use_kernel = n_elem * itemsize >= _TINY_BYTES

    bulk = (n_elem // _LANES) * _LANES
    if not use_kernel or bulk == 0:
        return _jnp_cross_stitch(x1, x2, w11, w12, w21, w22)

    rows = bulk // _LANES
    tail = n_elem - bulk
    sublane = max(8, 32 // itemsize)  # native sublane: 8 f32, 16 bf16, 32 int8

    num_cores, vmem_cap = _tpu_generation_info()

    # --- tile selection: ~4 MiB per operand tile (dtype-aware), capped so the
    # 4-operand x 2-buffer pipeline footprint stays well inside VMEM.
    max_tile_bytes = max(1 << 20, (vmem_cap - (16 << 20)) // 8)
    if tile_rows is None:
        tile_bytes = min(4 << 20, max_tile_bytes)
        tile_rows = tile_bytes // (_LANES * itemsize)
    tile_rows = max(sublane, (int(tile_rows) // sublane) * sublane)

    if num_cores >= 2 and rows >= 2 * sublane:
        # v7x: the parallel axis is sharded across 2 TCs -> keep the step count
        # even (or >= 8) so both cores get balanced work.
        steps = max(pl.cdiv(rows, tile_rows), 2)
        if steps % 2 == 1 and steps < 8:
            steps += 1
        tr = min(tile_rows, _round_up(pl.cdiv(rows, steps), sublane))
    elif rows <= tile_rows:
        # Single-TC chips (v5e/v6e) or tiny row count: one full-extent block.
        tr = rows
    else:
        tr = tile_rows
    grid = (pl.cdiv(rows, tr),)  # ragged last block is clipped by Pallas

    # Explicit scoped-VMEM limit: 4 operands x 2 pipeline buffers + headroom,
    # never below the 32 MiB default, never above the chip's per-core VMEM.
    tile_bytes_actual = tr * _LANES * itemsize
    pipeline_bytes = 4 * 2 * tile_bytes_actual
    vmem_limit = int(min(vmem_cap, max(32 << 20, pipeline_bytes + (8 << 20))))

    # Weights stay f32 (matches PyTorch f32 nn.Parameters); SMEM scalars are
    # 32-bit anyway, so this is free.
    weights = jnp.asarray([w11, w12, w21, w22], dtype=jnp.float32)

    x1f = x1.reshape(-1)
    x2f = x2.reshape(-1)
    if tail:
        x1_2d = x1f[:bulk].reshape(rows, _LANES)
        x2_2d = x2f[:bulk].reshape(rows, _LANES)
    else:
        x1_2d = x1f.reshape(rows, _LANES)
        x2_2d = x2f.reshape(rows, _LANES)

    data_spec = pl.BlockSpec((tr, _LANES), lambda i: (i, 0))

    extra = {}
    if donate_inputs:
        extra["input_output_aliases"] = {1: 0, 2: 1}  # x1->o1, x2->o2

    o1_2d, o2_2d = pl.pallas_call(
        _cross_stitch_kernel,
        out_shape=(
            jax.ShapeDtypeStruct((rows, _LANES), dtype),
            jax.ShapeDtypeStruct((rows, _LANES), dtype),
        ),
        grid=grid,
        in_specs=[
            pl.BlockSpec(memory_space=pltpu.SMEM),  # 4 scalar weights in SMEM
            data_spec,
            data_spec,
        ],
        out_specs=(data_spec, data_spec),
        compiler_params=pltpu.CompilerParams(
            dimension_semantics=("parallel",),
            vmem_limit_bytes=vmem_limit,
        ),
        cost_estimate=pl.CostEstimate(
            flops=6 * bulk,
            transcendentals=0,
            bytes_accessed=4 * bulk * itemsize,
        ),
        **extra,
    )(weights, x1_2d, x2_2d)

    o1f = o1_2d.reshape(-1)
    o2f = o2_2d.reshape(-1)
    if tail:
        # TODO(synk): the <128-element tail is computed in plain XLA and
        # concatenated; an in-kernel masked last-row store (pltpu.store with a
        # lane mask) would avoid the concatenate copy of the outputs.
        t1, t2 = _jnp_cross_stitch(x1f[bulk:], x2f[bulk:], w11, w12, w21, w22)
        o1f = jnp.concatenate([o1f, t1])
        o2f = jnp.concatenate([o2f, t2])
    return o1f.reshape(orig_shape), o2f.reshape(orig_shape)


if __name__ == "__main__":
    key = jax.random.PRNGKey(0)
    k1, k2, k3, k4, k5, k6 = jax.random.split(key, 6)

    # Deterministic parameters, matching the module's __init__ (all 0.5).
    w11, w12, w21, w22 = 0.5, 0.5, 0.5, 0.5

    # --- Test 1: module-sized NCHW input (2,4,16,16) -> tiny fast path ---
    x1 = jax.random.normal(k1, (2, 4, 16, 16), dtype=jnp.float32)
    x2 = jax.random.normal(k2, (2, 4, 16, 16), dtype=jnp.float32)
    y1, y2 = cross_stitch(x1, x2, w11, w12, w21, w22)
    jax.block_until_ready((y1, y2))
    assert y1.shape == x1.shape and y2.shape == x2.shape
    assert jnp.allclose(y1, w11 * x1 + w12 * x2, atol=1e-6), "x1_updated mismatch"
    assert jnp.allclose(y2, w21 * x1 + w22 * x2, atol=1e-6), "x2_updated mismatch"

    # --- Test 2: streaming-sized input -> Pallas kernel path ---
    a1 = jax.random.normal(k3, (2, 8, 64, 64), dtype=jnp.float32)  # 256 KiB/operand
    a2 = jax.random.normal(k4, (2, 8, 64, 64), dtype=jnp.float32)
    z1, z2 = cross_stitch(a1, a2, 0.9, 0.1, 0.25, 0.75)
    jax.block_until_ready((z1, z2))
    assert jnp.allclose(z1, 0.9 * a1 + 0.1 * a2, atol=1e-5), "stream x1 mismatch"
    assert jnp.allclose(z2, 0.25 * a1 + 0.75 * a2, atol=1e-5), "stream x2 mismatch"

    # --- Test 3: ragged flat size (n % 128 != 0), kernel forced:
    #     bulk rows go through the kernel, the 80-element tail through jnp ---
    b1 = jax.random.normal(k5, (1, 5, 16, 33), dtype=jnp.float32)  # 2640 = 20*128 + 80
    b2 = jax.random.normal(k6, (1, 5, 16, 33), dtype=jnp.float32)
    r1, r2 = cross_stitch(b1, b2, 0.3, 0.7, 0.6, 0.4, use_kernel=True)
    jax.block_until_ready((r1, r2))
    assert jnp.allclose(r1, 0.3 * b1 + 0.7 * b2, atol=1e-6), "ragged x1 mismatch"
    assert jnp.allclose(r2, 0.6 * b1 + 0.4 * b2, atol=1e-6), "ragged x2 mismatch"

    print("KERNEL_OK")
</pallas_src>

<mosaic_0001>
module attributes {stable_mosaic.version = 11 : i64} {
  func.func @_cross_stitch_kernel(%arg0: i32, %arg1: memref<4xf32, #tpu.memory_space<smem>>, %arg2: memref<512x128xf32, #tpu.memory_space<vmem>>, %arg3: memref<512x128xf32, #tpu.memory_space<vmem>>, %arg4: memref<512x128xf32, #tpu.memory_space<vmem>>, %arg5: memref<512x128xf32, #tpu.memory_space<vmem>>) attributes {dimension_semantics = [#tpu.dimension_semantics<parallel>], iteration_bounds = array<i64: 1>, scalar_prefetch = 0 : i64, scratch_operands = 0 : i64, tpu.core_type = #tpu.core_type<tc>, window_params = [{transform_indices = @transform_0, window_bounds = array<i64: 4>}, {transform_indices = @transform_1, window_bounds = array<i64: 512, 128>}, {transform_indices = @transform_2, window_bounds = array<i64: 512, 128>}, {transform_indices = @transform_3, window_bounds = array<i64: 512, 128>}, {transform_indices = @transform_4, window_bounds = array<i64: 512, 128>}]} {
    %c0 = arith.constant 0 : index
    %0 = memref.load %arg1[%c0] : memref<4xf32, #tpu.memory_space<smem>>
    %c1 = arith.constant 1 : index
    %1 = memref.load %arg1[%c1] : memref<4xf32, #tpu.memory_space<smem>>
    %c2 = arith.constant 2 : index
    %2 = memref.load %arg1[%c2] : memref<4xf32, #tpu.memory_space<smem>>
    %c3 = arith.constant 3 : index
    %3 = memref.load %arg1[%c3] : memref<4xf32, #tpu.memory_space<smem>>
    %c0_0 = arith.constant 0 : index
    %c0_1 = arith.constant 0 : index
    %4 = vector.load %arg2[%c0_0, %c0_1] : memref<512x128xf32, #tpu.memory_space<vmem>>, vector<512x128xf32>
    %c0_2 = arith.constant 0 : index
    %c0_3 = arith.constant 0 : index
    %5 = vector.load %arg3[%c0_2, %c0_3] : memref<512x128xf32, #tpu.memory_space<vmem>>, vector<512x128xf32>
    %6 = vector.broadcast %0 : f32 to vector<512x128xf32>
    %7 = arith.mulf %6, %4 : vector<512x128xf32>
    %8 = vector.broadcast %1 : f32 to vector<512x128xf32>
    %9 = arith.mulf %8, %5 : vector<512x128xf32>
    %10 = arith.addf %7, %9 : vector<512x128xf32>
    %c0_4 = arith.constant 0 : index
    %c0_5 = arith.constant 0 : index
    %11 = vector.load %arg4[%c0_4, %c0_5] : memref<512x128xf32, #tpu.memory_space<vmem>>, vector<512x128xf32>
    tpu.vector_store %arg4[%c0_4, %c0_5], %10 {strides = array<i32>} : memref<512x128xf32, #tpu.memory_space<vmem>>, vector<512x128xf32>,
    %12 = vector.broadcast %2 : f32 to vector<512x128xf32>
    %13 = arith.mulf %12, %4 : vector<512x128xf32>
    %14 = vector.broadcast %3 : f32 to vector<512x128xf32>
    %15 = arith.mulf %14, %5 : vector<512x128xf32>
    %16 = arith.addf %13, %15 : vector<512x128xf32>
    %c0_6 = arith.constant 0 : index
    %c0_7 = arith.constant 0 : index
    %17 = vector.load %arg5[%c0_6, %c0_7] : memref<512x128xf32, #tpu.memory_space<vmem>>, vector<512x128xf32>
    tpu.vector_store %arg5[%c0_6, %c0_7], %16 {strides = array<i32>} : memref<512x128xf32, #tpu.memory_space<vmem>>, vector<512x128xf32>,
    return
  }
  func.func @transform_0(%arg0: i32) -> i32 {
    %c0_i32 = arith.constant 0 : i32
    %c0_i32_0 = arith.constant 0 : i32
    return %c0_i32 : i32
  }
  func.func @transform_1(%arg0: i32) -> (i32, i32) {
    %c0_i32 = arith.constant 0 : i32
    %c0_i32_0 = arith.constant 0 : i32
    return %arg0, %c0_i32 : i32, i32
  }
  func.func @transform_2(%arg0: i32) -> (i32, i32) {
    %c0_i32 = arith.constant 0 : i32
    %c0_i32_0 = arith.constant 0 : i32
    return %arg0, %c0_i32 : i32, i32
  }
  func.func @transform_3(%arg0: i32) -> (i32, i32) {
    %c0_i32 = arith.constant 0 : i32
    %c0_i32_0 = arith.constant 0 : i32
    return %arg0, %c0_i32 : i32, i32
  }
  func.func @transform_4(%arg0: i32) -> (i32, i32) {
    %c0_i32 = arith.constant 0 : i32
    %c0_i32_0 = arith.constant 0 : i32
    return %arg0, %c0_i32 : i32, i32
  }
}

</mosaic_0001>

<llo_original>
// kernel: tpu_custom_call.1
$region0: #{tpu_custom_call.1}
  #allocation0 [shape = 'u32[]', space=smem, size = 0x4, offset = 0x4, fixed_abs, tag = 'smem constant byte address 0x4 - core index']
  #allocation1 [shape = 'u32[144,128]{1,0:T(1,128)}', space=vmem, size = 0x12000, scoped, tag = 'internal scratch']
  %s0 = inlined_call_operand.hbm [shape: f32[4], index: 0, kind: input, shape index: {}]
  %s1 = inlined_call_operand.hbm [shape: f32[512,128], index: 1, kind: input, shape index: {}]
  %s2 = inlined_call_operand.hbm [shape: f32[512,128], index: 2, kind: input, shape index: {}]
  %s3 = inlined_call_operand.hbm [shape: f32[512,128], index: 3, kind: output, shape index: {0}]
  %s4 = inlined_call_operand.hbm [shape: f32[512,128], index: 4, kind: output, shape index: {1}]
  %5 = xla_tuple %s3, %s4
  %s6 = sld [smem:[#allocation0]]
  $region42: #{tpu_custom_call.1} parent=0
    _
  %s8 = ssub.s32 1, %s6
  %s9 = scalar_select 0, %s8, %s6
  $region1: #{tpu_custom_call.1} parent=0
    #allocation2 [shape = 'u8[512]{0}', space=smem, size = 0x200, scoped, tag = 'input window, operand 0, single buffered']
    #allocation3 [shape = 's32[1]{0}', space=sflag, size = 0x4, scoped, tag = 'scoped memory for tpu_custom_call.1']
    #allocation4 [shape = 's32[1]{0}', space=sflag, size = 0x4, scoped, tag = 'scoped memory for tpu_custom_call.1']
    #allocation5 [shape = 's32[1]{0}', space=sflag, size = 0x4, scoped, tag = 'scoped memory for tpu_custom_call.1']
    #allocation6 [shape = 'u8[262144]{0}', space=vmem, size = 0x40000, scoped, tag = 'input window, operand 1, single buffered']
    #allocation7 [shape = 'u8[262144]{0}', space=vmem, size = 0x40000, scoped, tag = 'input window, operand 2, single buffered']
    #allocation8 [shape = 's32[1]{0}', space=sflag, size = 0x4, scoped, tag = 'scoped memory for tpu_custom_call.1']
    #allocation9 [shape = 'u8[262144]{0}', space=vmem, size = 0x40000, scoped, tag = 'output window, operand 0, single buffered']
    #allocation10 [shape = 'u8[262144]{0}', space=vmem, size = 0x40000, scoped, tag = 'output window, operand 1, single buffered']
    #allocation11 [shape = 's32[1]{0}', space=sflag, size = 0x4, scoped, tag = 'scoped memory for tpu_custom_call.1']
    %10 = vsyncpa [#allocation5], 0
    %11 = vsyncpa [#allocation3], 0
    %12 = vsyncpa [#allocation8], 0
    %13 = vsyncpa [#allocation4], 0
    %14 = vsyncpa [#allocation11], 0
    // Predicated region
    $region2: #{tpu_custom_call.1} parent=1 // pred_check
      _
    $region3: #{tpu_custom_call.1} parent=1 // pred_check_branch
      %16 = sbr.rel (0) target = $region5
    $region4: #{tpu_custom_call.1} parent=1 // pred_region
      %s18 = ssub.s32 16, 16
      %19 = vsyncadd [#allocation5], %s18
      %22 = dma.hbm_to_smem %s0, 16, [#allocation2], [#allocation5]
    $region5: #{tpu_custom_call.1} parent=1 // pred_fallthru
      _
    // Predicated region
    $region6: #{tpu_custom_call.1} parent=1 // pred_check
      _
    $region7: #{tpu_custom_call.1} parent=1 // pred_check_branch
      %24 = sbr.rel (0) target = $region9
    $region8: #{tpu_custom_call.1} parent=1 // pred_region
      %s26 = ssub.s32 8192, 8192
      %27 = vsyncadd [#allocation3], %s26
      %s28 = sshll.u32 [#allocation6], 4
      %s29 = int_to_ptr.vmem [resolvable:$true] %s28
      %34 = dma.hbm_to_vmem [thread:$0]  %s1, 8192, %s29, [#allocation3], 128, 128, 8
    $region9: #{tpu_custom_call.1} parent=1 // pred_fallthru
      _
    // Predicated region
    $region10: #{tpu_custom_call.1} parent=1 // pred_check
      _
    $region11: #{tpu_custom_call.1} parent=1 // pred_check_branch
      %36 = sbr.rel (0) target = $region13
    $region12: #{tpu_custom_call.1} parent=1 // pred_region
      %s38 = ssub.s32 8192, 8192
      %39 = vsyncadd [#allocation8], %s38
      %s40 = sshll.u32 [#allocation7], 4
      %s41 = int_to_ptr.vmem [resolvable:$true] %s40
      %46 = dma.hbm_to_vmem [thread:$0]  %s2, 8192, %s41, [#allocation8], 128, 128, 8
    $region13: #{tpu_custom_call.1} parent=1 // pred_fallthru
      _
    // Predicated region
    $region14: #{tpu_custom_call.1} parent=1 // pred_check
      _
    $region15: #{tpu_custom_call.1} parent=1 // pred_check_branch
      %48 = sbr.rel (0) target = $region17
    $region16: #{tpu_custom_call.1} parent=1 // pred_region
      %49 = dma.done [#allocation5], 16
    $region17: #{tpu_custom_call.1} parent=1 // pred_fallthru
      _
    // Predicated region
    $region18: #{tpu_custom_call.1} parent=1 // pred_check
      _
    $region19: #{tpu_custom_call.1} parent=1 // pred_check_branch
      %51 = sbr.rel (0) target = $region21
    $region20: #{tpu_custom_call.1} parent=1 // pred_region
      %52 = dma.done [#allocation3], 8192
    $region21: #{tpu_custom_call.1} parent=1 // pred_fallthru
      _
    // Predicated region
    $region22: #{tpu_custom_call.1} parent=1 // pred_check
      _
    $region23: #{tpu_custom_call.1} parent=1 // pred_check_branch
      %54 = sbr.rel (0) target = $region25
    $region24: #{tpu_custom_call.1} parent=1 // pred_region
      %55 = dma.done [#allocation8], 8192
    $region25: #{tpu_custom_call.1} parent=1 // pred_fallthru
      _
    %56 = sfence
    %s57 = sld [smem:[#allocation2]]
    %s58 = sld [smem:[#allocation2 + $0x1]]
    %s59 = sld [smem:[#allocation2 + $0x2]]
    %s60 = sld [smem:[#allocation2 + $0x3]]
    %v61 = vld [vmem:[#allocation6] sm:$0xff]
    %v62 = vld [vmem:[#allocation6 + $0x8] sm:$0xff]
    %v63 = vld [vmem:[#allocation6 + $0x10] sm:$0xff]
    %v64 = vld [vmem:[#allocation6 + $0x18] sm:$0xff]
    %v65 = vld [vmem:[#allocation6 + $0x20] sm:$0xff]
    %v66 = vld [vmem:[#allocation6 + $0x28] sm:$0xff]
    %v67 = vld [vmem:[#allocation6 + $0x30] sm:$0xff]
    %v68 = vld [vmem:[#allocation6 + $0x38] sm:$0xff]
    %v69 = vld [vmem:[#allocation6 + $0x40] sm:$0xff]
    %v70 = vld [vmem:[#allocation6 + $0x48] sm:$0xff]
    %v71 = vld [vmem:[#allocation6 + $0x50] sm:$0xff]
    %v72 = vld [vmem:[#allocation6 + $0x58] sm:$0xff]
    %v73 = vld [vmem:[#allocation6 + $0x60] sm:$0xff]
    %v74 = vld [vmem:[#allocation6 + $0x68] sm:$0xff]
    %v75 = vld [vmem:[#allocation6 + $0x70] sm:$0xff]
    %v76 = vld [vmem:[#allocation6 + $0x78] sm:$0xff]
    %v77 = vld [vmem:[#allocation6 + $0x80] sm:$0xff]
    %v78 = vld [vmem:[#allocation6 + $0x88] sm:$0xff]
    %v79 = vld [vmem:[#allocation6 + $0x90] sm:$0xff]
    %v80 = vld [vmem:[#allocation6 + $0x98] sm:$0xff]
    %v81 = vld [vmem:[#allocation6 + $0xa0] sm:$0xff]
    %v82 = vld [vmem:[#allocation6 + $0xa8] sm:$0xff]
    %v83 = vld [vmem:[#allocation6 + $0xb0] sm:$0xff]
    %v84 = vld [vmem:[#allocation6 + $0xb8] sm:$0xff]
    %v85 = vld [vmem:[#allocation6 + $0xc0] sm:$0xff]
    %v86 = vld [vmem:[#allocation6 + $0xc8] sm:$0xff]
    %v87 = vld [vmem:[#allocation6 + $0xd0] sm:$0xff]
    %v88 = vld [vmem:[#allocation6 + $0xd8] sm:$0xff]
    %v89 = vld [vmem:[#allocation6 + $0xe0] sm:$0xff]
    %v90 = vld [vmem:[#allocation6 + $0xe8] sm:$0xff]
    %v91 = vld [vmem:[#allocation6 + $0xf0] sm:$0xff]
    %v92 = vld [vmem:[#allocation6 + $0xf8] sm:$0xff]
    %v93 = vld [vmem:[#allocation6 + $0x100] sm:$0xff]
    %v94 = vld [vmem:[#allocation6 + $0x108] sm:$0xff]
    %v95 = vld [vmem:[#allocation6 + $0x110] sm:$0xff]
    %v96 = vld [vmem:[#allocation6 + $0x118] sm:$0xff]
    %v97 = vld [vmem:[#allocation6 + $0x120] sm:$0xff]
    %v98 = vld [vmem:[#allocation6 + $0x128] sm:$0xff]
    %v99 = vld [vmem:[#allocation6 + $0x130] sm:$0xff]
    %v100 = vld [vmem:[#allocation6 + $0x138] sm:$0xff]
    %v101 = vld [vmem:[#allocation6 + $0x140] sm:$0xff]
    %v102 = vld [vmem:[#allocation6 + $0x148] sm:$0xff]
    %v103 = vld [vmem:[#allocation6 + $0x150] sm:$0xff]
    %v104 = vld [vmem:[#allocation6 + $0x158] sm:$0xff]
    %v105 = vld [vmem:[#allocation6 + $0x160] sm:$0xff]
    %v106 = vld [vmem:[#allocation6 + $0x168] sm:$0xff]
    %v107 = vld [vmem:[#allocation6 + $0x170] sm:$0xff]
    %v108 = vld [vmem:[#allocation6 + $0x178] sm:$0xff]
    %v109 = vld [vmem:[#allocation6 + $0x180] sm:$0xff]
    %v110 = vld [vmem:[#allocation6 + $0x188] sm:$0xff]
    %v111 = vld [vmem:[#allocation6 + $0x190] sm:$0xff]
    %v112 = vld [vmem:[#allocation6 + $0x198] sm:$0xff]
    %v113 = vld [vmem:[#allocation6 + $0x1a0] sm:$0xff]
    %v114 = vld [vmem:[#allocation6 + $0x1a8] sm:$0xff]
    %v115 = vld [vmem:[#allocation6 + $0x1b0] sm:$0xff]
    %v116 = vld [vmem:[#allocation6 + $0x1b8] sm:$0xff]
    %v117 = vld [vmem:[#allocation6 + $0x1c0] sm:$0xff]
    %v118 = vld [vmem:[#allocation6 + $0x1c8] sm:$0xff]
    %v119 = vld [vmem:[#allocation6 + $0x1d0] sm:$0xff]
    %v120 = vld [vmem:[#allocation6 + $0x1d8] sm:$0xff]
    %v121 = vld [vmem:[#allocation6 + $0x1e0] sm:$0xff]
    %v122 = vld [vmem:[#allocation6 + $0x1e8] sm:$0xff]
    %v123 = vld [vmem:[#allocation6 + $0x1f0] sm:$0xff]
    %v124 = vld [vmem:[#allocation6 + $0x1f8] sm:$0xff]
    %v125 = vld [vmem:[#allocation7] sm:$0xff]
    %v126 = vld [vmem:[#allocation7 + $0x8] sm:$0xff]
    %v127 = vld [vmem:[#allocation7 + $0x10] sm:$0xff]
    %v128 = vld [vmem:[#allocation7 + $0x18] sm:$0xff]
    %v129 = vld [vmem:[#allocation7 + $0x20] sm:$0xff]
    %v130 = vld [vmem:[#allocation7 + $0x28] sm:$0xff]
    %v131 = vld [vmem:[#allocation7 + $0x30] sm:$0xff]
    %v132 = vld [vmem:[#allocation7 + $0x38] sm:$0xff]
    %v133 = vld [vmem:[#allocation7 + $0x40] sm:$0xff]
    %v134 = vld [vmem:[#allocation7 + $0x48] sm:$0xff]
    %v135 = vld [vmem:[#allocation7 + $0x50] sm:$0xff]
    %v136 = vld [vmem:[#allocation7 + $0x58] sm:$0xff]
    %v137 = vld [vmem:[#allocation7 + $0x60] sm:$0xff]
    %v138 = vld [vmem:[#allocation7 + $0x68] sm:$0xff]
    %v139 = vld [vmem:[#allocation7 + $0x70] sm:$0xff]
    %v140 = vld [vmem:[#allocation7 + $0x78] sm:$0xff]
    %v141 = vld [vmem:[#allocation7 + $0x80] sm:$0xff]
    %v142 = vld [vmem:[#allocation7 + $0x88] sm:$0xff]
    %v143 = vld [vmem:[#allocation7 + $0x90] sm:$0xff]
    %v144 = vld [vmem:[#allocation7 + $0x98] sm:$0xff]
    %v145 = vld [vmem:[#allocation7 + $0xa0] sm:$0xff]
    %v146 = vld [vmem:[#allocation7 + $0xa8] sm:$0xff]
    %v147 = vld [vmem:[#allocation7 + $0xb0] sm:$0xff]
    %v148 = vld [vmem:[#allocation7 + $0xb8] sm:$0xff]
    %v149 = vld [vmem:[#allocation7 + $0xc0] sm:$0xff]
    %v150 = vld [vmem:[#allocation7 + $0xc8] sm:$0xff]
    %v151 = vld [vmem:[#allocation7 + $0xd0] sm:$0xff]
    %v152 = vld [vmem:[#allocation7 + $0xd8] sm:$0xff]
    %v153 = vld [vmem:[#allocation7 + $0xe0] sm:$0xff]
    %v154 = vld [vmem:[#allocation7 + $0xe8] sm:$0xff]
    %v155 = vld [vmem:[#allocation7 + $0xf0] sm:$0xff]
    %v156 = vld [vmem:[#allocation7 + $0xf8] sm:$0xff]
    %v157 = vld [vmem:[#allocation7 + $0x100] sm:$0xff]
    %v158 = vld [vmem:[#allocation7 + $0x108] sm:$0xff]
    %v159 = vld [vmem:[#allocation7 + $0x110] sm:$0xff]
    %v160 = vld [vmem:[#allocation7 + $0x118] sm:$0xff]
    %v161 = vld [vmem:[#allocation7 + $0x120] sm:$0xff]
    %v162 = vld [vmem:[#allocation7 + $0x128] sm:$0xff]
    %v163 = vld [vmem:[#allocation7 + $0x130] sm:$0xff]
    %v164 = vld [vmem:[#allocation7 + $0x138] sm:$0xff]
    %v165 = vld [vmem:[#allocation7 + $0x140] sm:$0xff]
    %v166 = vld [vmem:[#allocation7 + $0x148] sm:$0xff]
    %v167 = vld [vmem:[#allocation7 + $0x150] sm:$0xff]
    %v168 = vld [vmem:[#allocation7 + $0x158] sm:$0xff]
    %v169 = vld [vmem:[#allocation7 + $0x160] sm:$0xff]
    %v170 = vld [vmem:[#allocation7 + $0x168] sm:$0xff]
    %v171 = vld [vmem:[#allocation7 + $0x170] sm:$0xff]
    %v172 = vld [vmem:[#allocation7 + $0x178] sm:$0xff]
    %v173 = vld [vmem:[#allocation7 + $0x180] sm:$0xff]
    %v174 = vld [vmem:[#allocation7 + $0x188] sm:$0xff]
    %v175 = vld [vmem:[#allocation7 + $0x190] sm:$0xff]
    %v176 = vld [vmem:[#allocation7 + $0x198] sm:$0xff]
    %v177 = vld [vmem:[#allocation7 + $0x1a0] sm:$0xff]
    %v178 = vld [vmem:[#allocation7 + $0x1a8] sm:$0xff]
    %v179 = vld [vmem:[#allocation7 + $0x1b0] sm:$0xff]
    %v180 = vld [vmem:[#allocation7 + $0x1b8] sm:$0xff]
    %v181 = vld [vmem:[#allocation7 + $0x1c0] sm:$0xff]
    %v182 = vld [vmem:[#allocation7 + $0x1c8] sm:$0xff]
    %v183 = vld [vmem:[#allocation7 + $0x1d0] sm:$0xff]
    %v184 = vld [vmem:[#allocation7 + $0x1d8] sm:$0xff]
    %v185 = vld [vmem:[#allocation7 + $0x1e0] sm:$0xff]
    %v186 = vld [vmem:[#allocation7 + $0x1e8] sm:$0xff]
    %v187 = vld [vmem:[#allocation7 + $0x1f0] sm:$0xff]
    %v188 = vld [vmem:[#allocation7 + $0x1f8] sm:$0xff]
    %v189 = vstv %s57
    %v190 = vmul.f32 %v189, %v61
    %v191 = vmul.f32 %v189, %v62
    %v192 = vmul.f32 %v189, %v63
    %v193 = vmul.f32 %v189, %v64
    %v194 = vmul.f32 %v189, %v65
    %v195 = vmul.f32 %v189, %v66
    %v196 = vmul.f32 %v189, %v67
    %v197 = vmul.f32 %v189, %v68
    %v198 = vmul.f32 %v189, %v69
    %v199 = vmul.f32 %v189, %v70
    %v200 = vmul.f32 %v189, %v71
    %v201 = vmul.f32 %v189, %v72
    %v202 = vmul.f32 %v189, %v73
    %v203 = vmul.f32 %v189, %v74
    %v204 = vmul.f32 %v189, %v75
    %v205 = vmul.f32 %v189, %v76
    %v206 = vmul.f32 %v189, %v77
    %v207 = vmul.f32 %v189, %v78
    %v208 = vmul.f32 %v189, %v79
    %v209 = vmul.f32 %v189, %v80
    %v210 = vmul.f32 %v189, %v81
    %v211 = vmul.f32 %v189, %v82
    %v212 = vmul.f32 %v189, %v83
    %v213 = vmul.f32 %v189, %v84
    %v214 = vmul.f32 %v189, %v85
    %v215 = vmul.f32 %v189, %v86
    %v216 = vmul.f32 %v189, %v87
    %v217 = vmul.f32 %v189, %v88
    %v218 = vmul.f32 %v189, %v89
    %v219 = vmul.f32 %v189, %v90
    %v220 = vmul.f32 %v189, %v91
    %v221 = vmul.f32 %v189, %v92
    %v222 = vmul.f32 %v189, %v93
    %v223 = vmul.f32 %v189, %v94
    %v224 = vmul.f32 %v189, %v95
    %v225 = vmul.f32 %v189, %v96
    %v226 = vmul.f32 %v189, %v97
    %v227 = vmul.f32 %v189, %v98
    %v228 = vmul.f32 %v189, %v99
    %v229 = vmul.f32 %v189, %v100
    %v230 = vmul.f32 %v189, %v101
    %v231 = vmul.f32 %v189, %v102
    %v232 = vmul.f32 %v189, %v103
    %v233 = vmul.f32 %v189, %v104
    %v234 = vmul.f32 %v189, %v105
    %v235 = vmul.f32 %v189, %v106
    %v236 = vmul.f32 %v189, %v107
    %v237 = vmul.f32 %v189, %v108
    %v238 = vmul.f32 %v189, %v109
    %v239 = vmul.f32 %v189, %v110
    %v240 = vmul.f32 %v189, %v111
    %v241 = vmul.f32 %v189, %v112
    %v242 = vmul.f32 %v189, %v113
    %v243 = vmul.f32 %v189, %v114
    %v244 = vmul.f32 %v189, %v115
    %v245 = vmul.f32 %v189, %v116
    %v246 = vmul.f32 %v189, %v117
    %v247 = vmul.f32 %v189, %v118
    %v248 = vmul.f32 %v189, %v119
    %v249 = vmul.f32 %v189, %v120
    %v250 = vmul.f32 %v189, %v121
    %v251 = vmul.f32 %v189, %v122
    %v252 = vmul.f32 %v189, %v123
    %v253 = vmul.f32 %v189, %v124
    %v254 = vstv %s58
    %v255 = vmul.f32 %v254, %v125
    %v256 = vmul.f32 %v254, %v126
    %v257 = vmul.f32 %v254, %v127
    %v258 = vmul.f32 %v254, %v128
    %v259 = vmul.f32 %v254, %v129
    %v260 = vmul.f32 %v254, %v130
    %v261 = vmul.f32 %v254, %v131
    %v262 = vmul.f32 %v254, %v132
    %v263 = vmul.f32 %v254, %v133
    %v264 = vmul.f32 %v254, %v134
    %v265 = vmul.f32 %v254, %v135
    %v266 = vmul.f32 %v254, %v136
    %v267 = vmul.f32 %v254, %v137
    %v268 = vmul.f32 %v254, %v138
    %v269 = vmul.f32 %v254, %v139
    %v270 = vmul.f32 %v254, %v140
    %v271 = vmul.f32 %v254, %v141
    %v272 = vmul.f32 %v254, %v142
    %v273 = vmul.f32 %v254, %v143
    %v274 = vmul.f32 %v254, %v144
    %v275 = vmul.f32 %v254, %v145
    %v276 = vmul.f32 %v254, %v146
    %v277 = vmul.f32 %v254, %v147
    %v278 = vmul.f32 %v254, %v148
    %v279 = vmul.f32 %v254, %v149
    %v280 = vmul.f32 %v254, %v150
    %v281 = vmul.f32 %v254, %v151
    %v282 = vmul.f32 %v254, %v152
    %v283 = vmul.f32 %v254, %v153
    %v284 = vmul.f32 %v254, %v154
    %v285 = vmul.f32 %v254, %v155
    %v286 = vmul.f32 %v254, %v156
    %v287 = vmul.f32 %v254, %v157
    %v288 = vmul.f32 %v254, %v158
    %v289 = vmul.f32 %v254, %v159
    %v290 = vmul.f32 %v254, %v160
    %v291 = vmul.f32 %v254, %v161
    %v292 = vmul.f32 %v254, %v162
    %v293 = vmul.f32 %v254, %v163
    %v294 = vmul.f32 %v254, %v164
    %v295 = vmul.f32 %v254, %v165
    %v296 = vmul.f32 %v254, %v166
    %v297 = vmul.f32 %v254, %v167
    %v298 = vmul.f32 %v254, %v168
    %v299 = vmul.f32 %v254, %v169
    %v300 = vmul.f32 %v254, %v170
    %v301 = vmul.f32 %v254, %v171
    %v302 = vmul.f32 %v254, %v172
    %v303 = vmul.f32 %v254, %v173
    %v304 = vmul.f32 %v254, %v174
    %v305 = vmul.f32 %v254, %v175
    %v306 = vmul.f32 %v254, %v176
    %v307 = vmul.f32 %v254, %v177
    %v308 = vmul.f32 %v254, %v178
    %v309 = vmul.f32 %v254, %v179
    %v310 = vmul.f32 %v254, %v180
    %v311 = vmul.f32 %v254, %v181
    %v312 = vmul.f32 %v254, %v182
    %v313 = vmul.f32 %v254, %v183
    %v314 = vmul.f32 %v254, %v184
    %v315 = vmul.f32 %v254, %v185
    %v316 = vmul.f32 %v254, %v186
    %v317 = vmul.f32 %v254, %v187
    %v318 = vmul.f32 %v254, %v188
    %v319 = vadd.f32 %v190, %v255
    %v320 = vadd.f32 %v191, %v256
    %v321 = vadd.f32 %v192, %v257
    %v322 = vadd.f32 %v193, %v258
    %v323 = vadd.f32 %v194, %v259
    %v324 = vadd.f32 %v195, %v260
    %v325 = vadd.f32 %v196, %v261
    %v326 = vadd.f32 %v197, %v262
    %v327 = vadd.f32 %v198, %v263
    %v328 = vadd.f32 %v199, %v264
    %v329 = vadd.f32 %v200, %v265
    %v330 = vadd.f32 %v201, %v266
    %v331 = vadd.f32 %v202, %v267
    %v332 = vadd.f32 %v203, %v268
    %v333 = vadd.f32 %v204, %v269
    %v334 = vadd.f32 %v205, %v270
    %v335 = vadd.f32 %v206, %v271
    %v336 = vadd.f32 %v207, %v272
    %v337 = vadd.f32 %v208, %v273
    %v338 = vadd.f32 %v209, %v274
    %v339 = vadd.f32 %v210, %v275
    %v340 = vadd.f32 %v211, %v276
    %v341 = vadd.f32 %v212, %v277
    %v342 = vadd.f32 %v213, %v278
    %v343 = vadd.f32 %v214, %v279
    %v344 = vadd.f32 %v215, %v280
    %v345 = vadd.f32 %v216, %v281
    %v346 = vadd.f32 %v217, %v282
    %v347 = vadd.f32 %v218, %v283
    %v348 = vadd.f32 %v219, %v284
    %v349 = vadd.f32 %v220, %v285
    %v350 = vadd.f32 %v221, %v286
    %v351 = vadd.f32 %v222, %v287
    %v352 = vadd.f32 %v223, %v288
    %v353 = vadd.f32 %v224, %v289
    %v354 = vadd.f32 %v225, %v290
    %v355 = vadd.f32 %v226, %v291
    %v356 = vadd.f32 %v227, %v292
    %v357 = vadd.f32 %v228, %v293
    %v358 = vadd.f32 %v229, %v294
    %v359 = vadd.f32 %v230, %v295
    %v360 = vadd.f32 %v231, %v296
    %v361 = vadd.f32 %v232, %v297
    %v362 = vadd.f32 %v233, %v298
    %v363 = vadd.f32 %v234, %v299
    %v364 = vadd.f32 %v235, %v300
    %v365 = vadd.f32 %v236, %v301
    %v366 = vadd.f32 %v237, %v302
    %v367 = vadd.f32 %v238, %v303
    %v368 = vadd.f32 %v239, %v304
    %v369 = vadd.f32 %v240, %v305
    %v370 = vadd.f32 %v241, %v306
    %v371 = vadd.f32 %v242, %v307
    %v372 = vadd.f32 %v243, %v308
    %v373 = vadd.f32 %v244, %v309
    %v374 = vadd.f32 %v245, %v310
    %v375 = vadd.f32 %v246, %v311
    %v376 = vadd.f32 %v247, %v312
    %v377 = vadd.f32 %v248, %v313
    %v378 = vadd.f32 %v249, %v314
    %v379 = vadd.f32 %v250, %v315
    %v380 = vadd.f32 %v251, %v316
    %v381 = vadd.f32 %v252, %v317
    %v382 = vadd.f32 %v253, %v318
    %383 = vst [vmem:[#allocation9] sm:$0xff] %v319
    %384 = vst [vmem:[#allocation9 + $0x8] sm:$0xff] %v320
    %385 = vst [vmem:[#allocation9 + $0x10] sm:$0xff] %v321
    %386 = vst [vmem:[#allocation9 + $0x18] sm:$0xff] %v322
    %387 = vst [vmem:[#allocation9 + $0x20] sm:$0xff] %v323
    %388 = vst [vmem:[#allocation9 + $0x28] sm:$0xff] %v324
    %389 = vst [vmem:[#allocation9 + $0x30] sm:$0xff] %v325
    %390 = vst [vmem:[#allocation9 + $0x38] sm:$0xff] %v326
    %391 = vst [vmem:[#allocation9 + $0x40] sm:$0xff] %v327
    %392 = vst [vmem:[#allocation9 + $0x48] sm:$0xff] %v328
    %393 = vst [vmem:[#allocation9 + $0x50] sm:$0xff] %v329
    %394 = vst [vmem:[#allocation9 + $0x58] sm:$0xff] %v330
    %395 = vst [vmem:[#allocation9 + $0x60] sm:$0xff] %v331
    %396 = vst [vmem:[#allocation9 + $0x68] sm:$0xff] %v332
    %397 = vst [vmem:[#allocation9 + $0x70] sm:$0xff] %v333
    %398 = vst [vmem:[#allocation9 + $0x78] sm:$0xff] %v334
    %399 = vst [vmem:[#allocation9 + $0x80] sm:$0xff] %v335
    %400 = vst [vmem:[#allocation9 + $0x88] sm:$0xff] %v336
    %401 = vst [vmem:[#allocation9 + $0x90] sm:$0xff] %v337
    %402 = vst [vmem:[#allocation9 + $0x98] sm:$0xff] %v338
    %403 = vst [vmem:[#allocation9 + $0xa0] sm:$0xff] %v339
    %404 = vst [vmem:[#allocation9 + $0xa8] sm:$0xff] %v340
    %405 = vst [vmem:[#allocation9 + $0xb0] sm:$0xff] %v341
    %406 = vst [vmem:[#allocation9 + $0xb8] sm:$0xff] %v342
    %407 = vst [vmem:[#allocation9 + $0xc0] sm:$0xff] %v343
    %408 = vst [vmem:[#allocation9 + $0xc8] sm:$0xff] %v344
    %409 = vst [vmem:[#allocation9 + $0xd0] sm:$0xff] %v345
    %410 = vst [vmem:[#allocation9 + $0xd8] sm:$0xff] %v346
    %411 = vst [vmem:[#allocation9 + $0xe0] sm:$0xff] %v347
    %412 = vst [vmem:[#allocation9 + $0xe8] sm:$0xff] %v348
    %413 = vst [vmem:[#allocation9 + $0xf0] sm:$0xff] %v349
    %414 = vst [vmem:[#allocation9 + $0xf8] sm:$0xff] %v350
    %415 = vst [vmem:[#allocation9 + $0x100] sm:$0xff] %v351
    %416 = vst [vmem:[#allocation9 + $0x108] sm:$0xff] %v352
    %417 = vst [vmem:[#allocation9 + $0x110] sm:$0xff] %v353
    %418 = vst [vmem:[#allocation9 + $0x118] sm:$0xff] %v354
    %419 = vst [vmem:[#allocation9 + $0x120] sm:$0xff] %v355
    %420 = vst [vmem:[#allocation9 + $0x128] sm:$0xff] %v356
    %421 = vst [vmem:[#allocation9 + $0x130] sm:$0xff] %v357
    %422 = vst [vmem:[#allocation9 + $0x138] sm:$0xff] %v358
    %423 = vst [vmem:[#allocation9 + $0x140] sm:$0xff] %v359
    %424 = vst [vmem:[#allocation9 + $0x148] sm:$0xff] %v360
    %425 = vst [vmem:[#allocation9 + $0x150] sm:$0xff] %v361
    %426 = vst [vmem:[#allocation9 + $0x158] sm:$0xff] %v362
    %427 = vst [vmem:[#allocation9 + $0x160] sm:$0xff] %v363
    %428 = vst [vmem:[#allocation9 + $0x168] sm:$0xff] %v364
    %429 = vst [vmem:[#allocation9 + $0x170] sm:$0xff] %v365
    %430 = vst [vmem:[#allocation9 + $0x178] sm:$0xff] %v366
    %431 = vst [vmem:[#allocation9 + $0x180] sm:$0xff] %v367
    %432 = vst [vmem:[#allocation9 + $0x188] sm:$0xff] %v368
    %433 = vst [vmem:[#allocation9 + $0x190] sm:$0xff] %v369
    %434 = vst [vmem:[#allocation9 + $0x198] sm:$0xff] %v370
    %435 = vst [vmem:[#allocation9 + $0x1a0] sm:$0xff] %v371
    %436 = vst [vmem:[#allocation9 + $0x1a8] sm:$0xff] %v372
    %437 = vst [vmem:[#allocation9 + $0x1b0] sm:$0xff] %v373
    %438 = vst [vmem:[#allocation9 + $0x1b8] sm:$0xff] %v374
    %439 = vst [vmem:[#allocation9 + $0x1c0] sm:$0xff] %v375
    %440 = vst [vmem:[#allocation9 + $0x1c8] sm:$0xff] %v376
    %441 = vst [vmem:[#allocation9 + $0x1d0] sm:$0xff] %v377
    %442 = vst [vmem:[#allocation9 + $0x1d8] sm:$0xff] %v378
    %443 = vst [vmem:[#allocation9 + $0x1e0] sm:$0xff] %v379
    %444 = vst [vmem:[#allocation9 + $0x1e8] sm:$0xff] %v380
    %445 = vst [vmem:[#allocation9 + $0x1f0] sm:$0xff] %v381
    %446 = vst [vmem:[#allocation9 + $0x1f8] sm:$0xff] %v382
    %v447 = vstv %s59
    %v448 = vmul.f32 %v447, %v61
    %v449 = vmul.f32 %v447, %v62
    %v450 = vmul.f32 %v447, %v63
    %v451 = vmul.f32 %v447, %v64
    %v452 = vmul.f32 %v447, %v65
    %v453 = vmul.f32 %v447, %v66
    %v454 = vmul.f32 %v447, %v67
    %v455 = vmul.f32 %v447, %v68
    %v456 = vmul.f32 %v447, %v69
    %v457 = vmul.f32 %v447, %v70
    %v458 = vmul.f32 %v447, %v71
    %v459 = vmul.f32 %v447, %v72
    %v460 = vmul.f32 %v447, %v73
    %v461 = vmul.f32 %v447, %v74
    %v462 = vmul.f32 %v447, %v75
    %v463 = vmul.f32 %v447, %v76
    %v464 = vmul.f32 %v447, %v77
    %v465 = vmul.f32 %v447, %v78
    %v466 = vmul.f32 %v447, %v79
    %v467 = vmul.f32 %v447, %v80
    %v468 = vmul.f32 %v447, %v81
    %v469 = vmul.f32 %v447, %v82
    %v470 = vmul.f32 %v447, %v83
    %v471 = vmul.f32 %v447, %v84
    %v472 = vmul.f32 %v447, %v85
    %v473 = vmul.f32 %v447, %v86
    %v474 = vmul.f32 %v447, %v87
    %v475 = vmul.f32 %v447, %v88
    %v476 = vmul.f32 %v447, %v89
    %v477 = vmul.f32 %v447, %v90
    %v478 = vmul.f32 %v447, %v91
    %v479 = vmul.f32 %v447, %v92
    %v480 = vmul.f32 %v447, %v93
    %v481 = vmul.f32 %v447, %v94
    %v482 = vmul.f32 %v447, %v95
    %v483 = vmul.f32 %v447, %v96
    %v484 = vmul.f32 %v447, %v97
    %v485 = vmul.f32 %v447, %v98
    %v486 = vmul.f32 %v447, %v99
    %v487 = vmul.f32 %v447, %v100
    %v488 = vmul.f32 %v447, %v101
    %v489 = vmul.f32 %v447, %v102
    %v490 = vmul.f32 %v447, %v103
    %v491 = vmul.f32 %v447, %v104
    %v492 = vmul.f32 %v447, %v105
    %v493 = vmul.f32 %v447, %v106
    %v494 = vmul.f32 %v447, %v107
    %v495 = vmul.f32 %v447, %v108
    %v496 = vmul.f32 %v447, %v109
    %v497 = vmul.f32 %v447, %v110
    %v498 = vmul.f32 %v447, %v111
    %v499 = vmul.f32 %v447, %v112
    %v500 = vmul.f32 %v447, %v113
    %v501 = vmul.f32 %v447, %v114
    %v502 = vmul.f32 %v447, %v115
    %v503 = vmul.f32 %v447, %v116
    %v504 = vmul.f32 %v447, %v117
    %v505 = vmul.f32 %v447, %v118
    %v506 = vmul.f32 %v447, %v119
    %v507 = vmul.f32 %v447, %v120
    %v508 = vmul.f32 %v447, %v121
    %v509 = vmul.f32 %v447, %v122
    %v510 = vmul.f32 %v447, %v123
    %v511 = vmul.f32 %v447, %v124
    %v512 = vstv %s60
    %v513 = vmul.f32 %v512, %v125
    %v514 = vmul.f32 %v512, %v126
    %v515 = vmul.f32 %v512, %v127
    %v516 = vmul.f32 %v512, %v128
    %v517 = vmul.f32 %v512, %v129
    %v518 = vmul.f32 %v512, %v130
    %v519 = vmul.f32 %v512, %v131
    %v520 = vmul.f32 %v512, %v132
    %v521 = vmul.f32 %v512, %v133
    %v522 = vmul.f32 %v512, %v134
    %v523 = vmul.f32 %v512, %v135
    %v524 = vmul.f32 %v512, %v136
    %v525 = vmul.f32 %v512, %v137
    %v526 = vmul.f32 %v512, %v138
    %v527 = vmul.f32 %v512, %v139
    %v528 = vmul.f32 %v512, %v140
    %v529 = vmul.f32 %v512, %v141
    %v530 = vmul.f32 %v512, %v142
    %v531 = vmul.f32 %v512, %v143
    %v532 = vmul.f32 %v512, %v144
    %v533 = vmul.f32 %v512, %v145
    %v534 = vmul.f32 %v512, %v146
    %v535 = vmul.f32 %v512, %v147
    %v536 = vmul.f32 %v512, %v148
    %v537 = vmul.f32 %v512, %v149
    %v538 = vmul.f32 %v512, %v150
    %v539 = vmul.f32 %v512, %v151
    %v540 = vmul.f32 %v512, %v152
    %v541 = vmul.f32 %v512, %v153
    %v542 = vmul.f32 %v512, %v154
    %v543 = vmul.f32 %v512, %v155
    %v544 = vmul.f32 %v512, %v156
    %v545 = vmul.f32 %v512, %v157
    %v546 = vmul.f32 %v512, %v158
    %v547 = vmul.f32 %v512, %v159
    %v548 = vmul.f32 %v512, %v160
    %v549 = vmul.f32 %v512, %v161
    %v550 = vmul.f32 %v512, %v162
    %v551 = vmul.f32 %v512, %v163
    %v552 = vmul.f32 %v512, %v164
    %v553 = vmul.f32 %v512, %v165
    %v554 = vmul.f32 %v512, %v166
    %v555 = vmul.f32 %v512, %v167
    %v556 = vmul.f32 %v512, %v168
    %v557 = vmul.f32 %v512, %v169
    %v558 = vmul.f32 %v512, %v170
    %v559 = vmul.f32 %v512, %v171
    %v560 = vmul.f32 %v512, %v172
    %v561 = vmul.f32 %v512, %v173
    %v562 = vmul.f32 %v512, %v174
    %v563 = vmul.f32 %v512, %v175
    %v564 = vmul.f32 %v512, %v176
    %v565 = vmul.f32 %v512, %v177
    %v566 = vmul.f32 %v512, %v178
    %v567 = vmul.f32 %v512, %v179
    %v568 = vmul.f32 %v512, %v180
    %v569 = vmul.f32 %v512, %v181
    %v570 = vmul.f32 %v512, %v182
    %v571 = vmul.f32 %v512, %v183
    %v572 = vmul.f32 %v512, %v184
    %v573 = vmul.f32 %v512, %v185
    %v574 = vmul.f32 %v512, %v186
    %v575 = vmul.f32 %v512, %v187
    %v576 = vmul.f32 %v512, %v188
    %v577 = vadd.f32 %v448, %v513
    %v578 = vadd.f32 %v449, %v514
    %v579 = vadd.f32 %v450, %v515
    %v580 = vadd.f32 %v451, %v516
    %v581 = vadd.f32 %v452, %v517
    %v582 = vadd.f32 %v453, %v518
    %v583 = vadd.f32 %v454, %v519
    %v584 = vadd.f32 %v455, %v520
    %v585 = vadd.f32 %v456, %v521
    %v586 = vadd.f32 %v457, %v522
    %v587 = vadd.f32 %v458, %v523
    %v588 = vadd.f32 %v459, %v524
    %v589 = vadd.f32 %v460, %v525
    %v590 = vadd.f32 %v461, %v526
    %v591 = vadd.f32 %v462, %v527
    %v592 = vadd.f32 %v463, %v528
    %v593 = vadd.f32 %v464, %v529
    %v594 = vadd.f32 %v465, %v530
    %v595 = vadd.f32 %v466, %v531
    %v596 = vadd.f32 %v467, %v532
    %v597 = vadd.f32 %v468, %v533
    %v598 = vadd.f32 %v469, %v534
    %v599 = vadd.f32 %v470, %v535
    %v600 = vadd.f32 %v471, %v536
    %v601 = vadd.f32 %v472, %v537
    %v602 = vadd.f32 %v473, %v538
    %v603 = vadd.f32 %v474, %v539
    %v604 = vadd.f32 %v475, %v540
    %v605 = vadd.f32 %v476, %v541
    %v606 = vadd.f32 %v477, %v542
    %v607 = vadd.f32 %v478, %v543
    %v608 = vadd.f32 %v479, %v544
    %v609 = vadd.f32 %v480, %v545
    %v610 = vadd.f32 %v481, %v546
    %v611 = vadd.f32 %v482, %v547
    %v612 = vadd.f32 %v483, %v548
    %v613 = vadd.f32 %v484, %v549
    %v614 = vadd.f32 %v485, %v550
    %v615 = vadd.f32 %v486, %v551
    %v616 = vadd.f32 %v487, %v552
    %v617 = vadd.f32 %v488, %v553
    %v618 = vadd.f32 %v489, %v554
    %v619 = vadd.f32 %v490, %v555
    %v620 = vadd.f32 %v491, %v556
    %v621 = vadd.f32 %v492, %v557
    %v622 = vadd.f32 %v493, %v558
    %v623 = vadd.f32 %v494, %v559
    %v624 = vadd.f32 %v495, %v560
    %v625 = vadd.f32 %v496, %v561
    %v626 = vadd.f32 %v497, %v562
    %v627 = vadd.f32 %v498, %v563
    %v628 = vadd.f32 %v499, %v564
    %v629 = vadd.f32 %v500, %v565
    %v630 = vadd.f32 %v501, %v566
    %v631 = vadd.f32 %v502, %v567
    %v632 = vadd.f32 %v503, %v568
    %v633 = vadd.f32 %v504, %v569
    %v634 = vadd.f32 %v505, %v570
    %v635 = vadd.f32 %v506, %v571
    %v636 = vadd.f32 %v507, %v572
    %v637 = vadd.f32 %v508, %v573
    %v638 = vadd.f32 %v509, %v574
    %v639 = vadd.f32 %v510, %v575
    %v640 = vadd.f32 %v511, %v576
    %641 = vst [vmem:[#allocation10] sm:$0xff] %v577
    %642 = vst [vmem:[#allocation10 + $0x8] sm:$0xff] %v578
    %643 = vst [vmem:[#allocation10 + $0x10] sm:$0xff] %v579
    %644 = vst [vmem:[#allocation10 + $0x18] sm:$0xff] %v580
    %645 = vst [vmem:[#allocation10 + $0x20] sm:$0xff] %v581
    %646 = vst [vmem:[#allocation10 + $0x28] sm:$0xff] %v582
    %647 = vst [vmem:[#allocation10 + $0x30] sm:$0xff] %v583
    %648 = vst [vmem:[#allocation10 + $0x38] sm:$0xff] %v584
    %649 = vst [vmem:[#allocation10 + $0x40] sm:$0xff] %v585
    %650 = vst [vmem:[#allocation10 + $0x48] sm:$0xff] %v586
    %651 = vst [vmem:[#allocation10 + $0x50] sm:$0xff] %v587
    %652 = vst [vmem:[#allocation10 + $0x58] sm:$0xff] %v588
    %653 = vst [vmem:[#allocation10 + $0x60] sm:$0xff] %v589
    %654 = vst [vmem:[#allocation10 + $0x68] sm:$0xff] %v590
    %655 = vst [vmem:[#allocation10 + $0x70] sm:$0xff] %v591
    %656 = vst [vmem:[#allocation10 + $0x78] sm:$0xff] %v592
    %657 = vst [vmem:[#allocation10 + $0x80] sm:$0xff] %v593
    %658 = vst [vmem:[#allocation10 + $0x88] sm:$0xff] %v594
    %659 = vst [vmem:[#allocation10 + $0x90] sm:$0xff] %v595
    %660 = vst [vmem:[#allocation10 + $0x98] sm:$0xff] %v596
    %661 = vst [vmem:[#allocation10 + $0xa0] sm:$0xff] %v597
    %662 = vst [vmem:[#allocation10 + $0xa8] sm:$0xff] %v598
    %663 = vst [vmem:[#allocation10 + $0xb0] sm:$0xff] %v599
    %664 = vst [vmem:[#allocation10 + $0xb8] sm:$0xff] %v600
    %665 = vst [vmem:[#allocation10 + $0xc0] sm:$0xff] %v601
    %666 = vst [vmem:[#allocation10 + $0xc8] sm:$0xff] %v602
    %667 = vst [vmem:[#allocation10 + $0xd0] sm:$0xff] %v603
    %668 = vst [vmem:[#allocation10 + $0xd8] sm:$0xff] %v604
    %669 = vst [vmem:[#allocation10 + $0xe0] sm:$0xff] %v605
    %670 = vst [vmem:[#allocation10 + $0xe8] sm:$0xff] %v606
    %671 = vst [vmem:[#allocation10 + $0xf0] sm:$0xff] %v607
    %672 = vst [vmem:[#allocation10 + $0xf8] sm:$0xff] %v608
    %673 = vst [vmem:[#allocation10 + $0x100] sm:$0xff] %v609
    %674 = vst [vmem:[#allocation10 + $0x108] sm:$0xff] %v610
    %675 = vst [vmem:[#allocation10 + $0x110] sm:$0xff] %v611
    %676 = vst [vmem:[#allocation10 + $0x118] sm:$0xff] %v612
    %677 = vst [vmem:[#allocation10 + $0x120] sm:$0xff] %v613
    %678 = vst [vmem:[#allocation10 + $0x128] sm:$0xff] %v614
    %679 = vst [vmem:[#allocation10 + $0x130] sm:$0xff] %v615
    %680 = vst [vmem:[#allocation10 + $0x138] sm:$0xff] %v616
    %681 = vst [vmem:[#allocation10 + $0x140] sm:$0xff] %v617
    %682 = vst [vmem:[#allocation10 + $0x148] sm:$0xff] %v618
    %683 = vst [vmem:[#allocation10 + $0x150] sm:$0xff] %v619
    %684 = vst [vmem:[#allocation10 + $0x158] sm:$0xff] %v620
    %685 = vst [vmem:[#allocation10 + $0x160] sm:$0xff] %v621
    %686 = vst [vmem:[#allocation10 + $0x168] sm:$0xff] %v622
    %687 = vst [vmem:[#allocation10 + $0x170] sm:$0xff] %v623
    %688 = vst [vmem:[#allocation10 + $0x178] sm:$0xff] %v624
    %689 = vst [vmem:[#allocation10 + $0x180] sm:$0xff] %v625
    %690 = vst [vmem:[#allocation10 + $0x188] sm:$0xff] %v626
    %691 = vst [vmem:[#allocation10 + $0x190] sm:$0xff] %v627
    %692 = vst [vmem:[#allocation10 + $0x198] sm:$0xff] %v628
    %693 = vst [vmem:[#allocation10 + $0x1a0] sm:$0xff] %v629
    %694 = vst [vmem:[#allocation10 + $0x1a8] sm:$0xff] %v630
    %695 = vst [vmem:[#allocation10 + $0x1b0] sm:$0xff] %v631
    %696 = vst [vmem:[#allocation10 + $0x1b8] sm:$0xff] %v632
    %697 = vst [vmem:[#allocation10 + $0x1c0] sm:$0xff] %v633
    %698 = vst [vmem:[#allocation10 + $0x1c8] sm:$0xff] %v634
    %699 = vst [vmem:[#allocation10 + $0x1d0] sm:$0xff] %v635
    %700 = vst [vmem:[#allocation10 + $0x1d8] sm:$0xff] %v636
    %701 = vst [vmem:[#allocation10 + $0x1e0] sm:$0xff] %v637
    %702 = vst [vmem:[#allocation10 + $0x1e8] sm:$0xff] %v638
    %703 = vst [vmem:[#allocation10 + $0x1f0] sm:$0xff] %v639
    %704 = vst [vmem:[#allocation10 + $0x1f8] sm:$0xff] %v640
    // Predicated region
    $region26: #{tpu_custom_call.1} parent=1 // pred_check
      _
    $region27: #{tpu_custom_call.1} parent=1 // pred_check_branch
      %706 = sbr.rel (0) target = $region29
    $region28: #{tpu_custom_call.1} parent=1 // pred_region
      %s708 = ssub.s32 8192, 8192
      %709 = vsyncadd [#allocation4], %s708
      %s710 = sshll.u32 [#allocation9], 4
      %s711 = int_to_ptr.vmem [resolvable:$true] %s710
      %716 = dma.vmem_to_hbm [thread:$0]  %s711, 8192, %s3, [#allocation4], 128, 128, 8
    $region29: #{tpu_custom_call.1} parent=1 // pred_fallthru
      _
    // Predicated region
    $region30: #{tpu_custom_call.1} parent=1 // pred_check
      _
    $region31: #{tpu_custom_call.1} parent=1 // pred_check_branch
      %718 = sbr.rel (0) target = $region33
    $region32: #{tpu_custom_call.1} parent=1 // pred_region
      %s720 = ssub.s32 8192, 8192
      %721 = vsyncadd [#allocation11], %s720
      %s722 = sshll.u32 [#allocation10], 4
      %s723 = int_to_ptr.vmem [resolvable:$true] %s722
      %728 = dma.vmem_to_hbm [thread:$0]  %s723, 8192, %s4, [#allocation11], 128, 128, 8
    $region33: #{tpu_custom_call.1} parent=1 // pred_fallthru
      _
    // Predicated region
    $region34: #{tpu_custom_call.1} parent=1 // pred_check
      _
    $region35: #{tpu_custom_call.1} parent=1 // pred_check_branch
      %730 = sbr.rel (0) target = $region37
    $region36: #{tpu_custom_call.1} parent=1 // pred_region
      %731 = dma.done [#allocation4], 8192
    $region37: #{tpu_custom_call.1} parent=1 // pred_fallthru
      _
    // Predicated region
    $region38: #{tpu_custom_call.1} parent=1 // pred_check
      _
    $region39: #{tpu_custom_call.1} parent=1 // pred_check_branch
      %733 = sbr.rel (0) target = $region41
    $region40: #{tpu_custom_call.1} parent=1 // pred_region
      %734 = dma.done [#allocation11], 8192
    $region41: #{tpu_custom_call.1} parent=1 // pred_fallthru
      _
    %735 = vsyncpa [#allocation3], 1
    %736 = vsyncpa [#allocation8], 1
    %737 = vsyncpa [#allocation4], 1
    %738 = vsyncpa [#allocation11], 1
    %739 = vsyncpa [#allocation5], 1

</llo_original>
